<compile_context>
chip_gen: v5e
topology: v5e:2x2
jax: 0.10.0
libtpu: 0.0.40
codegen_flags: <defaults>
</compile_context>

<pallas_src>
import jax
import jax.numpy as jnp
from jax.experimental import pallas as pl
from jax.experimental.pallas import tpu as pltpu


def se_kernel(x_ref, w1_ref, w2_ref, o_ref):
    x = x_ref[...]                                   # (Bt, C, HW), input dtype
    hw = x.shape[-1]

    # Squeeze: global average pool over HW (lane reduction, f32 accumulate).
    pooled = jnp.sum(x, axis=-1, dtype=jnp.float32) * (1.0 / hw)      # (Bt, C)

    # Excitation on the VPU/XLU: broadcast-multiply + lane reduce.
    # (Avoids N=1 MXU matmuls; total work is only ~2*Bt*Cr*C MACs.)
    w1 = w1_ref[...]                                 # (Cr, C)  f32
    w2 = w2_ref[...]                                 # (C, Cr)  f32
    h = jnp.sum(w1[None, :, :] * pooled[:, None, :], axis=-1)         # (Bt, Cr)
    h = jnp.maximum(h, 0.0)
    s = jnp.sum(w2[None, :, :] * h[:, None, :], axis=-1)              # (Bt, C)
    s = jax.nn.sigmoid(s)

    # Scale: per-channel gate broadcast over spatial positions, in input dtype.
    gate = s.astype(x.dtype)[:, :, None]             # (Bt, C, 1)
    o_ref[...] = x * gate


def _pick_batch_tile(B, bytes_per_batch, budget_bytes=4 * 1024 * 1024):
    """Largest divisor of B whose input block fits `budget_bytes`; prefer a
    grid of length >= 2 so both v7x TensorCores get work."""
    divisors = [d for d in range(1, B + 1) if B % d == 0]
    fitting = [d for d in divisors if d * bytes_per_batch <= budget_bytes] or [1]
    bt = max(fitting)
    if B // bt < 2:
        two_plus = [d for d in fitting if B // d >= 2]
        if two_plus:
            bt = max(two_plus)
    return bt


def se_layer(x, w1, w2):
    """x: (B, C, H, W).  w1: (C//r, C), w2: (C, C//r)  (nn.Linear layout)."""
    B, C, H, W = x.shape
    Cr = w1.shape[0]
    HW = H * W
    x_flat = x.reshape(B, C, HW)

    # Hoist weight casts out of the kernel (done once, not per grid step).
    w1 = w1.astype(jnp.float32)
    w2 = w2.astype(jnp.float32)

    bytes_per_batch = C * HW * jnp.dtype(x.dtype).itemsize
    Bt = _pick_batch_tile(B, bytes_per_batch)
    grid = (B // Bt,)
    # TODO(synk): for very large C*HW (>~8 MiB per batch on v7x) tile HW inside
    # the kernel (two-phase pooled-accumulate then scale via emit_pipeline)
    # instead of holding the full (C, HW) slab resident.

    out = pl.pallas_call(
        se_kernel,
        out_shape=jax.ShapeDtypeStruct((B, C, HW), x.dtype),
        grid_spec=pltpu.PrefetchScalarGridSpec(
            num_scalar_prefetch=0,
            grid=grid,
            in_specs=[
                pl.BlockSpec((Bt, C, HW), lambda b: (b, 0, 0)),  # batch tile
                pl.BlockSpec((Cr, C), lambda b: (0, 0)),         # fc1 weight
                pl.BlockSpec((C, Cr), lambda b: (0, 0)),         # fc2 weight
            ],
            out_specs=pl.BlockSpec((Bt, C, HW), lambda b: (b, 0, 0)),
        ),
        compiler_params=pltpu.CompilerParams(
            dimension_semantics=("parallel",),
            vmem_limit_bytes=32 * 1024 * 1024,
        ),
    )(x_flat, w1, w2)
    return out.reshape(B, C, H, W)


def se_layer_ref(x, w1, w2):
    """Pure-JAX reference mirroring the PyTorch forward."""
    y = jnp.mean(x, axis=(2, 3))                     # (B, C)
    y = jnp.maximum(y @ w1.T, 0.0)                   # (B, C//r)
    y = jax.nn.sigmoid(y @ w2.T)                     # (B, C)
    return x * y[:, :, None, None]


if __name__ == "__main__":
    B, C, H, W = 2, 64, 16, 16
    reduction = 16
    Cr = C // reduction

    key = jax.random.PRNGKey(0)
    kx, k1, k2 = jax.random.split(key, 3)

    x = jax.random.normal(kx, (B, C, H, W), dtype=jnp.float32)

    # Deterministic Linear init (PyTorch default: U(-1/sqrt(fan_in), 1/sqrt(fan_in)))
    b1 = 1.0 / jnp.sqrt(C)
    b2 = 1.0 / jnp.sqrt(Cr)
    w1 = jax.random.uniform(k1, (Cr, C), jnp.float32, minval=-b1, maxval=b1)
    w2 = jax.random.uniform(k2, (C, Cr), jnp.float32, minval=-b2, maxval=b2)

    out = jax.block_until_ready(se_layer(x, w1, w2))
    ref = jax.block_until_ready(se_layer_ref(x, w1, w2))

    assert out.shape == (B, C, H, W)
    assert jnp.allclose(out, ref, atol=1e-5, rtol=1e-5)
    print("KERNEL_OK")
</pallas_src>

<mosaic_0001>
module attributes {stable_mosaic.version = 11 : i64} {
  func.func @se_kernel(%arg0: i32, %arg1: memref<1x64x256xf32, #tpu.memory_space<vmem>>, %arg2: memref<4x64xf32, #tpu.memory_space<vmem>>, %arg3: memref<64x4xf32, #tpu.memory_space<vmem>>, %arg4: memref<1x64x256xf32, #tpu.memory_space<vmem>>) attributes {dimension_semantics = [#tpu.dimension_semantics<parallel>], iteration_bounds = array<i64: 2>, scalar_prefetch = 0 : i64, scratch_operands = 0 : i64, tpu.core_type = #tpu.core_type<tc>, window_params = [{transform_indices = @transform_0, window_bounds = array<i64: 1, 64, 256>}, {pipeline_mode = #tpu.pipeline_mode<synchronous>, transform_indices = @transform_1, window_bounds = array<i64: 4, 64>}, {pipeline_mode = #tpu.pipeline_mode<synchronous>, transform_indices = @transform_2, window_bounds = array<i64: 64, 4>}, {transform_indices = @transform_3, window_bounds = array<i64: 1, 64, 256>}]} {
    %c0 = arith.constant 0 : index
    %c0_0 = arith.constant 0 : index
    %c0_1 = arith.constant 0 : index
    %0 = vector.load %arg1[%c0, %c0_0, %c0_1] : memref<1x64x256xf32, #tpu.memory_space<vmem>>, vector<1x64x256xf32>
    %cst = arith.constant dense<0.000000e+00> : vector<1x64xf32>
    %1 = vector.multi_reduction <add>, %0, %cst [2] : vector<1x64x256xf32> to vector<1x64xf32>
    %cst_2 = arith.constant 3.906250e-03 : f32
    %2 = vector.broadcast %cst_2 : f32 to vector<1x64xf32>
    %3 = arith.mulf %1, %2 : vector<1x64xf32>
    %c0_3 = arith.constant 0 : index
    %c0_4 = arith.constant 0 : index
    %4 = vector.load %arg2[%c0_3, %c0_4] : memref<4x64xf32, #tpu.memory_space<vmem>>, vector<4x64xf32>
    %c0_5 = arith.constant 0 : index
    %c0_6 = arith.constant 0 : index
    %5 = vector.load %arg3[%c0_5, %c0_6] : memref<64x4xf32, #tpu.memory_space<vmem>>, vector<64x4xf32>
    %6 = vector.shape_cast %4 : vector<4x64xf32> to vector<1x4x64xf32>
    %7 = vector.shape_cast %3 : vector<1x64xf32> to vector<1x1x64xf32>
    %8 = vector.broadcast %7 : vector<1x1x64xf32> to vector<1x4x64xf32>
    %9 = arith.mulf %6, %8 : vector<1x4x64xf32>
    %cst_7 = arith.constant dense<0.000000e+00> : vector<1x4xf32>
    %10 = vector.multi_reduction <add>, %9, %cst_7 [2] : vector<1x4x64xf32> to vector<1x4xf32>
    %cst_8 = arith.constant 0.000000e+00 : f32
    %11 = vector.broadcast %cst_8 : f32 to vector<1x4xf32>
    %12 = arith.maximumf %10, %11 : vector<1x4xf32>
    %13 = vector.shape_cast %5 : vector<64x4xf32> to vector<1x64x4xf32>
    %14 = vector.shape_cast %12 : vector<1x4xf32> to vector<1x1x4xf32>
    %15 = vector.broadcast %14 : vector<1x1x4xf32> to vector<1x64x4xf32>
    %16 = arith.mulf %13, %15 : vector<1x64x4xf32>
    %cst_9 = arith.constant dense<0.000000e+00> : vector<1x64xf32>
    %17 = vector.multi_reduction <add>, %16, %cst_9 [2] : vector<1x64x4xf32> to vector<1x64xf32>
    %18 = arith.negf %17 : vector<1x64xf32>
    %19 = math.exp %18 : vector<1x64xf32>
    %cst_10 = arith.constant 1.000000e+00 : f32
    %20 = vector.broadcast %cst_10 : f32 to vector<1x64xf32>
    %21 = arith.addf %20, %19 : vector<1x64xf32>
    %22 = arith.divf %20, %21 : vector<1x64xf32>
    %23 = vector.shape_cast %22 : vector<1x64xf32> to vector<1x64x1xf32>
    %24 = vector.broadcast %23 : vector<1x64x1xf32> to vector<1x64x256xf32>
    %25 = arith.mulf %0, %24 : vector<1x64x256xf32>
    %c0_11 = arith.constant 0 : index
    %c0_12 = arith.constant 0 : index
    %c0_13 = arith.constant 0 : index
    %26 = vector.load %arg4[%c0_11, %c0_12, %c0_13] : memref<1x64x256xf32, #tpu.memory_space<vmem>>, vector<1x64x256xf32>
    tpu.vector_store %arg4[%c0_11, %c0_12, %c0_13], %25 {strides = array<i32>} : memref<1x64x256xf32, #tpu.memory_space<vmem>>, vector<1x64x256xf32>,
    return
  }
  func.func @transform_0(%arg0: i32) -> (i32, i32, i32) {
    %c0_i32 = arith.constant 0 : i32
    %c0_i32_0 = arith.constant 0 : i32
    %c0_i32_1 = arith.constant 0 : i32
    return %arg0, %c0_i32, %c0_i32_0 : i32, i32, i32
  }
  func.func @transform_1(%arg0: i32) -> (i32, i32) {
    %c0_i32 = arith.constant 0 : i32
    %c0_i32_0 = arith.constant 0 : i32
    %c0_i32_1 = arith.constant 0 : i32
    return %c0_i32, %c0_i32_0 : i32, i32
  }
  func.func @transform_2(%arg0: i32) -> (i32, i32) {
    %c0_i32 = arith.constant 0 : i32
    %c0_i32_0 = arith.constant 0 : i32
    %c0_i32_1 = arith.constant 0 : i32
    return %c0_i32, %c0_i32_0 : i32, i32
  }
  func.func @transform_3(%arg0: i32) -> (i32, i32, i32) {
    %c0_i32 = arith.constant 0 : i32
    %c0_i32_0 = arith.constant 0 : i32
    %c0_i32_1 = arith.constant 0 : i32
    return %arg0, %c0_i32, %c0_i32_0 : i32, i32, i32
  }
}

</mosaic_0001>

<llo_original>
// kernel: tpu_custom_call.1
$region0: #{tpu_custom_call.1}
  #allocation0 [shape = 'u32[]', space=smem, size = 0x4, offset = 0x4, fixed_abs, tag = 'smem constant byte address 0x4 - core index']
  #allocation1 [shape = 'u32[72,128]{1,0:T(1,128)}', space=vmem, size = 0x9000, scoped, tag = 'internal scratch']
  %s0 = inlined_call_operand.hbm [shape: f32[2,64,256], index: 0, kind: input, shape index: {}]
  %s1 = inlined_call_operand.vmem [shape: f32[4,64], index: 1, kind: input, shape index: {}]
  %s2 = inlined_call_operand.vmem [shape: f32[64,4], index: 2, kind: input, shape index: {}]
  %s3 = inlined_call_operand.hbm [shape: f32[2,64,256], index: 3, kind: output, shape index: {}]
  %s4 = sld [smem:[#allocation0]]
  $region49: #{tpu_custom_call.1} parent=0
    _
  %s6 = ssub.s32 1, %s4
  %s7 = scalar_select 0, %s6, %s4
  $region1: #{tpu_custom_call.1} parent=0
    #allocation2 [shape = 'u8[131072]{0}', space=vmem, size = 0x20000, scoped, tag = 'input window, operand 0']
    #allocation3 [shape = 's32[2]{0}', space=sflag, size = 0x8, scoped, tag = 'scoped memory for tpu_custom_call.1']
    #allocation4 [shape = 's32[2]{0}', space=sflag, size = 0x8, scoped, tag = 'scoped memory for tpu_custom_call.1']
    #allocation5 [shape = 'u8[131072]{0}', space=vmem, size = 0x20000, scoped, tag = 'output window, operand 0']
    %8 = vsyncpa [#allocation3], 0
    %s9 = scalar_lea.sflag [#allocation3], 1
    %10 = vsyncpa %s9, 0
    %11 = vsyncpa [#allocation4], 0
    %s12 = scalar_lea.sflag [#allocation4], 1
    %13 = vsyncpa %s12, 0
    loop: start=0, step=1, limit=4
    $region2: #{tpu_custom_call.1} parent=1 // loop_pre_header
      _
    $region3: #{tpu_custom_call.1} parent=1 // loop_header
      %s15 = sphi 0, %s19
      %p16 = scmp.ge.s32.totalorder %s15, 4
      %s25 = sphi 0, %s27
      %s28 = sphi 0, %s25
      %s29 = sphi 0, %s28
      %s45 = sphi 0, %s29
      %s49 = sphi 0, %s49
      %s51 = sphi 0, %s49
      %s52 = sphi 0, %s51
      %s66 = sphi 0, %s52
      %s70 = sphi 0, %s70
      %s72 = sphi 0, %s70
      %s73 = sphi 0, %s72
      %s87 = sphi 0, %s73
      %s93 = sphi 0, %s95
      %s96 = sphi 0, %s93
      %s97 = sphi 0, %s96
      %s113 = sphi 0, %s97
    $region4: #{tpu_custom_call.1} parent=1 // loop_header_branch
      %18 = sbr.rel (%p16) target = $region8
    $region5: #{tpu_custom_call.1} parent=1 // loop_body
      %s20 = ssub.s32 %s15, 1
      %s21 = ssub.s32 %s15, 2
      %s22 = sadd.s32 %s15, 1
      %s23 = ssub.s32 %s15, %s22
      %p24 = scmp.eq.s32.totalorder %s23, 0
      %s26 = sadd.s32 %s25, 1
      %s27 = scalar_select %p24, %s25, %s26
      %p30 = pneg %p24
      %p31 = scmp.eq.s32.totalorder %s15, 1
      %p32 = por %p30, %p31
      %p33 = scmp.ne.s32.totalorder %s25, %s28
      %p34 = scmp.eq.s32.totalorder %s15, 0
      %p35 = por %p33, %p34
      %p36 = scmp.ne.s32.totalorder %s25, %s28
      %p37 = scmp.eq.s32.totalorder %s20, 1
      %p38 = por %p36, %p37
      %p39 = scmp.ne.s32.totalorder %s28, %s29
      %p40 = scmp.eq.s32.totalorder %s20, 0
      %p41 = por %p39, %p40
      %p42 = scmp.ne.s32.totalorder %s28, %s29
      %p43 = scmp.eq.s32.totalorder %s21, 1
      %p44 = por %p42, %p43
      %p46 = scmp.ne.s32.totalorder %s29, %s45
      %p47 = scmp.eq.s32.totalorder %s21, 0
      %p48 = por %p46, %p47
      %s50 = sadd.s32 %s49, 1
      %p53 = scmp.eq.s32.totalorder %s15, 1
      %p54 = scmp.ne.s32.totalorder %s49, %s51
      %p55 = scmp.eq.s32.totalorder %s15, 0
      %p56 = por %p54, %p55
      %p57 = scmp.ne.s32.totalorder %s49, %s51
      %p58 = scmp.eq.s32.totalorder %s20, 1
      %p59 = por %p57, %p58
      %p60 = scmp.ne.s32.totalorder %s51, %s52
      %p61 = scmp.eq.s32.totalorder %s20, 0
      %p62 = por %p60, %p61
      %p63 = scmp.ne.s32.totalorder %s51, %s52
      %p64 = scmp.eq.s32.totalorder %s21, 1
      %p65 = por %p63, %p64
      %p67 = scmp.ne.s32.totalorder %s52, %s66
      %p68 = scmp.eq.s32.totalorder %s21, 0
      %p69 = por %p67, %p68
      %s71 = sadd.s32 %s70, 1
      %p74 = scmp.eq.s32.totalorder %s15, 1
      %p75 = scmp.ne.s32.totalorder %s70, %s72
      %p76 = scmp.eq.s32.totalorder %s15, 0
      %p77 = por %p75, %p76
      %p78 = scmp.ne.s32.totalorder %s70, %s72
      %p79 = scmp.eq.s32.totalorder %s20, 1
      %p80 = por %p78, %p79
      %p81 = scmp.ne.s32.totalorder %s72, %s73
      %p82 = scmp.eq.s32.totalorder %s20, 0
      %p83 = por %p81, %p82
      %p84 = scmp.ne.s32.totalorder %s72, %s73
      %p85 = scmp.eq.s32.totalorder %s21, 1
      %p86 = por %p84, %p85
      %p88 = scmp.ne.s32.totalorder %s73, %s87
      %p89 = scmp.eq.s32.totalorder %s21, 0
      %p90 = por %p88, %p89
      %s91 = ssub.s32 %s15, %s22
      %p92 = scmp.eq.s32.totalorder %s91, 0
      %s94 = sadd.s32 %s93, 1
      %s95 = scalar_select %p92, %s93, %s94
      %p98 = pneg %p92
      %p99 = scmp.eq.s32.totalorder %s15, 1
      %p100 = por %p98, %p99
      %p101 = scmp.ne.s32.totalorder %s93, %s96
      %p102 = scmp.eq.s32.totalorder %s15, 0
      %p103 = por %p101, %p102
      %p104 = scmp.ne.s32.totalorder %s93, %s96
      %p105 = scmp.eq.s32.totalorder %s20, 1
      %p106 = por %p104, %p105
      %p107 = scmp.ne.s32.totalorder %s96, %s97
      %p108 = scmp.eq.s32.totalorder %s20, 0
      %p109 = por %p107, %p108
      %p110 = scmp.ne.s32.totalorder %s96, %s97
      %p111 = scmp.eq.s32.totalorder %s21, 1
      %p112 = por %p110, %p111
      %p114 = scmp.ne.s32.totalorder %s97, %s113
      %p115 = scmp.eq.s32.totalorder %s21, 0
      %p116 = por %p114, %p115
      %p117 = scmp.le.s32.totalorder 1, %s15
      %p118 = scmp.lt.s32.totalorder %s15, 3
      %p119 = pnand %p117, %p118
      %p120 = pneg %p119
      // Predicated region
      $region9: #{tpu_custom_call.1} parent=5 // pred_check
        _
      $region10: #{tpu_custom_call.1} parent=5 // pred_check_branch
        %122 = sbr.rel (%p119) target = $region12
      $region11: #{tpu_custom_call.1} parent=5 // pred_region
        %s123 = ssub.s32 %s15, 1
        // Predicated region
        $region13: #{tpu_custom_call.1} parent=11 // pred_check
          %p124 = pneg %p62
        $region14: #{tpu_custom_call.1} parent=11 // pred_check_branch
          %126 = sbr.rel (%p124) target = $region16
        $region15: #{tpu_custom_call.1} parent=11 // pred_region
          _
        $region16: #{tpu_custom_call.1} parent=11 // pred_fallthru
          _
        // Predicated region
        $region17: #{tpu_custom_call.1} parent=11 // pred_check
          %p127 = pneg %p83
        $region18: #{tpu_custom_call.1} parent=11 // pred_check_branch
          %129 = sbr.rel (%p127) target = $region20
        $region19: #{tpu_custom_call.1} parent=11 // pred_region
          _
        $region20: #{tpu_custom_call.1} parent=11 // pred_fallthru
          _
      $region12: #{tpu_custom_call.1} parent=5 // pred_fallthru
        _
      %p130 = scmp.lt.s32.totalorder %s15, 2
      // Predicated region
      $region21: #{tpu_custom_call.1} parent=5 // pred_check
        %p131 = pneg %p130
      $region22: #{tpu_custom_call.1} parent=5 // pred_check_branch
        %133 = sbr.rel (%p131) target = $region24
      $region23: #{tpu_custom_call.1} parent=5 // pred_region
        // Predicated region
        $region25: #{tpu_custom_call.1} parent=23 // pred_check
          %p134 = pneg %p35
        $region26: #{tpu_custom_call.1} parent=23 // pred_check_branch
          %136 = sbr.rel (%p134) target = $region28
        $region27: #{tpu_custom_call.1} parent=23 // pred_region
          %s137 = sand.u32 %s25, 1
          %s138 = scalar_lea.sflag [#allocation3], %s137
          %s139 = sand.u32 %s25, 1
          %s140 = smul.addr %s139, 128
          %s141 = scalar_lea.vmem [#allocation2], %s140
          %143 = vsyncadd %s138, 0
          %s144 = smul.addr %s15, 16
          %s145 = smul.addr %s144, 8
          %s146 = scalar_lea.hbm %s0, %s145
          %s147 = sshll.u32 %s146, 4
          %s148 = int_to_ptr.hbm [resolvable:$true] %s147
          %s149 = sshll.u32 %s141, 4
          %s150 = int_to_ptr.vmem [resolvable:$true] %s149
          %155 = dma.hbm_to_vmem [thread:$0]  %s148, 2048, %s150, %s138, 256, 256, 16
        $region28: #{tpu_custom_call.1} parent=23 // pred_fallthru
          _
      $region24: #{tpu_custom_call.1} parent=5 // pred_fallthru
        _
      %p156 = scmp.le.s32.totalorder 1, %s15
      %p157 = scmp.lt.s32.totalorder %s15, 3
      %p158 = pnand %p156, %p157
      %p159 = pneg %p158
      // Predicated region
      $region29: #{tpu_custom_call.1} parent=5 // pred_check
        _
      $region30: #{tpu_custom_call.1} parent=5 // pred_check_branch
        %161 = sbr.rel (%p158) target = $region32
      $region31: #{tpu_custom_call.1} parent=5 // pred_region
        %s162 = ssub.s32 %s15, 1
        %s163 = sand.u32 %s28, 1
        %s164 = scalar_lea.sflag [#allocation3], %s163
        %s165 = sand.u32 %s28, 1
        %s166 = smul.addr %s165, 128
        %s167 = scalar_lea.vmem [#allocation2], %s166
        // Predicated region
        $region33: #{tpu_custom_call.1} parent=31 // pred_check
          %p168 = pneg %p41
        $region34: #{tpu_custom_call.1} parent=31 // pred_check_branch
          %170 = sbr.rel (%p168) target = $region36
        $region35: #{tpu_custom_call.1} parent=31 // pred_region
          %172 = dma.done %s164, 2048
        $region36: #{tpu_custom_call.1} parent=31 // pred_fallthru
          _
        %s173 = sand.u32 %s28, 1
        %s174 = scalar_lea.sflag [#allocation3], %s173
        %s175 = sand.u32 %s28, 1
        %s176 = smul.addr %s175, 128
        %s177 = scalar_lea.vmem [#allocation2], %s176
        %p178 = pneg %p41
        %p179 = pneg %p38
        %p180 = pneg %p62
        %p181 = pneg %p59
        %p182 = pneg %p83
        %p183 = pneg %p80
        %p184 = pneg %p109
        %p185 = pneg %p106
        %s186 = sand.u32 %s96, 1
        %s187 = scalar_lea.sflag [#allocation4], %s186
        %s188 = sand.u32 %s96, 1
        %s189 = smul.addr %s188, 128
        %s190 = scalar_lea.vmem [#allocation5], %s189
        %v191 = vld [vmem:[%s167] sm:$0xff]
        %v192 = vld [vmem:[%s167 + $0x8] sm:$0xff]
        %v193 = vld [vmem:[%s167 + $0x10] sm:$0xff]
        %v194 = vld [vmem:[%s167 + $0x18] sm:$0xff]
        %v195 = vld [vmem:[%s167 + $0x20] sm:$0xff]
        %v196 = vld [vmem:[%s167 + $0x28] sm:$0xff]
        %v197 = vld [vmem:[%s167 + $0x30] sm:$0xff]
        %v198 = vld [vmem:[%s167 + $0x38] sm:$0xff]
        %v199 = vld [vmem:[%s167 + $0x40] sm:$0xff]
        %v200 = vld [vmem:[%s167 + $0x48] sm:$0xff]
        %v201 = vld [vmem:[%s167 + $0x50] sm:$0xff]
        %v202 = vld [vmem:[%s167 + $0x58] sm:$0xff]
        %v203 = vld [vmem:[%s167 + $0x60] sm:$0xff]
        %v204 = vld [vmem:[%s167 + $0x68] sm:$0xff]
        %v205 = vld [vmem:[%s167 + $0x70] sm:$0xff]
        %v206 = vld [vmem:[%s167 + $0x78] sm:$0xff]
        %v207 = vadd.f32 %v191, %v192
        %208 = vadd.xlane.f32.xlu0 %v207
        %v209 = vpop.xlane.xlu0 %208
        %v210 = vadd.f32 %v193, %v194
        %211 = vadd.xlane.f32.xlu0 %v210
        %v212 = vpop.xlane.xlu0 %211
        %v213 = vadd.f32 %v195, %v196
        %214 = vadd.xlane.f32.xlu0 %v213
        %v215 = vpop.xlane.xlu0 %214
        %v216 = vadd.f32 %v197, %v198
        %217 = vadd.xlane.f32.xlu0 %v216
        %v218 = vpop.xlane.xlu0 %217
        %v219 = vadd.f32 %v199, %v200
        %220 = vadd.xlane.f32.xlu0 %v219
        %v221 = vpop.xlane.xlu0 %220
        %v222 = vadd.f32 %v201, %v202
        %223 = vadd.xlane.f32.xlu0 %v222
        %v224 = vpop.xlane.xlu0 %223
        %v225 = vadd.f32 %v203, %v204
        %226 = vadd.xlane.f32.xlu0 %v225
        %v227 = vpop.xlane.xlu0 %226
        %v228 = vadd.f32 %v205, %v206
        %229 = vadd.xlane.f32.xlu0 %v228
        %v230 = vpop.xlane.xlu0 %229
        %v231 = vmul.f32 %v209, 0.00390625
        %v232 = vmul.f32 %v212, 0.00390625
        %v233 = vmul.f32 %v215, 0.00390625
        %v234 = vmul.f32 %v218, 0.00390625
        %v235 = vmul.f32 %v221, 0.00390625
        %v236 = vmul.f32 %v224, 0.00390625
        %v237 = vmul.f32 %v227, 0.00390625
        %v238 = vmul.f32 %v230, 0.00390625
        %v239 = vld [vmem:[%s1] sm:$0xf]
        %v240 = vld [vmem:[%s2] sm:$0xff]
        %v241 = vld [vmem:[%s2 + $0x8] sm:$0xff]
        %v242 = vld [vmem:[%s2 + $0x10] sm:$0xff]
        %v243 = vld [vmem:[%s2 + $0x18] sm:$0xff]
        %v244 = vld [vmem:[%s2 + $0x20] sm:$0xff]
        %v245 = vld [vmem:[%s2 + $0x28] sm:$0xff]
        %v246 = vld [vmem:[%s2 + $0x30] sm:$0xff]
        %v247 = vld [vmem:[%s2 + $0x38] sm:$0xff]
        %v256 = vlaneseq
        %v257 = vand.u32 %v256, 127
        %v258 = vperm.slane %v231, %v257
        %v259 = vadd.s32 %v257, 4294967288
        %v260 = vperm.slane %v232, %v259
        %vm261 = vcmask 130112
        %v262 = vsel %vm261, %v260, %v258
        %v263 = vadd.s32 %v257, 4294967280
        %v264 = vperm.slane %v233, %v263
        %vm265 = vcmask 195712
        %v266 = vsel %vm265, %v264, %v262
        %v267 = vadd.s32 %v257, 4294967272
        %v268 = vperm.slane %v234, %v267
        %vm269 = vcmask 261312
        %v270 = vsel %vm269, %v268, %v266
        %v271 = vadd.s32 %v257, 4294967264
        %v272 = vperm.slane %v235, %v271
        %vm273 = vcmask 326912
        %v274 = vsel %vm273, %v272, %v270
        %v275 = vadd.s32 %v257, 4294967256
        %v276 = vperm.slane %v236, %v275
        %vm277 = vcmask 392512
        %v278 = vsel %vm277, %v276, %v274
        %v279 = vadd.s32 %v257, 4294967248
        %v280 = vperm.slane %v237, %v279
        %vm281 = vcmask 458112
        %v282 = vsel %vm281, %v280, %v278
        %v283 = vadd.s32 %v257, 4294967240
        %v284 = vperm.slane %v238, %v283
        %vm285 = vcmask 523712
        %v286 = vsel %vm285, %v284, %v282
        %vm287 = vcmask 1042434
        %v288 = vsel %vm287, %v286, %v286
        %vm289 = vcmask 1043459
        %v290 = vsel %vm289, %v286, %v288
        %v292 = vmul.f32 %v239, %v290
        %vm293 = vcmask 519168
        %v294 = vsel %vm293, %v292, 0.0
        %295 = vadd.xlane.f32.xlu0 %v294
        %v296 = vpop.xlane.xlu0 %295
        %v297 = vmax.f32 %v296, 0.0
        %v299 = vperm.slane %v297, %v257
        %v300 = vsel %vm287, %v299, %v299
        %v301 = vsel %vm289, %v299, %v300
        %vm302 = vcmask 1044484
        %v303 = vsel %vm302, %v299, %v301
        %vm304 = vcmask 1045509
        %v305 = vsel %vm304, %v299, %v303
        %vm306 = vcmask 1046534
        %v307 = vsel %vm306, %v299, %v305
        %vm308 = vcmask 1047559
        %v309 = vsel %vm308, %v299, %v307
        %v311 = vmul.f32 %v240, %v309
        %v312 = vmul.f32 %v241, %v309
        %v313 = vmul.f32 %v242, %v309
        %v314 = vmul.f32 %v243, %v309
        %v315 = vmul.f32 %v244, %v309
        %v316 = vmul.f32 %v245, %v309
        %v317 = vmul.f32 %v246, %v309
        %v318 = vmul.f32 %v247, %v309
        %vm319 = vcmask 31744
        %v320 = vsel %vm319, %v311, 0.0
        %321 = vadd.xlane.f32.xlu0 %v320
        %v322 = vpop.xlane.xlu0 %321
        %v323 = vsel %vm319, %v312, 0.0
        %324 = vadd.xlane.f32.xlu0 %v323
        %v325 = vpop.xlane.xlu0 %324
        %v326 = vsel %vm319, %v313, 0.0
        %327 = vadd.xlane.f32.xlu0 %v326
        %v328 = vpop.xlane.xlu0 %327
        %v329 = vsel %vm319, %v314, 0.0
        %330 = vadd.xlane.f32.xlu0 %v329
        %v331 = vpop.xlane.xlu0 %330
        %v332 = vsel %vm319, %v315, 0.0
        %333 = vadd.xlane.f32.xlu0 %v332
        %v334 = vpop.xlane.xlu0 %333
        %v335 = vsel %vm319, %v316, 0.0
        %336 = vadd.xlane.f32.xlu0 %v335
        %v337 = vpop.xlane.xlu0 %336
        %v338 = vsel %vm319, %v317, 0.0
        %339 = vadd.xlane.f32.xlu0 %v338
        %v340 = vpop.xlane.xlu0 %339
        %v341 = vsel %vm319, %v318, 0.0
        %342 = vadd.xlane.f32.xlu0 %v341
        %v343 = vpop.xlane.xlu0 %342
        %v344 = vxor.u32 %v322, 2147483648
        %v345 = vxor.u32 %v325, 2147483648
        %v346 = vxor.u32 %v328, 2147483648
        %v347 = vxor.u32 %v331, 2147483648
        %v348 = vxor.u32 %v334, 2147483648
        %v349 = vxor.u32 %v337, 2147483648
        %v350 = vxor.u32 %v340, 2147483648
        %v351 = vxor.u32 %v343, 2147483648
        %v352 = vmul.f32 %v344, 1.442695
        %v353 = vpow.pop %v352
        %v354 = vmul.f32 %v345, 1.442695
        %v355 = vpow.pop %v354
        %v356 = vmul.f32 %v346, 1.442695
        %v357 = vpow.pop %v356
        %v358 = vmul.f32 %v347, 1.442695
        %v359 = vpow.pop %v358
        %v360 = vmul.f32 %v348, 1.442695
        %v361 = vpow.pop %v360
        %v362 = vmul.f32 %v349, 1.442695
        %v363 = vpow.pop %v362
        %v364 = vmul.f32 %v350, 1.442695
        %v365 = vpow.pop %v364
        %v366 = vmul.f32 %v351, 1.442695
        %v367 = vpow.pop %v366
        %v368 = vadd.f32 %v353, 1.0
        %v369 = vadd.f32 %v355, 1.0
        %v370 = vadd.f32 %v357, 1.0
        %v371 = vadd.f32 %v359, 1.0
        %v372 = vadd.f32 %v361, 1.0
        %v373 = vadd.f32 %v363, 1.0
        %v374 = vadd.f32 %v365, 1.0
        %v375 = vadd.f32 %v367, 1.0
        %v376 = vrcp.pop %v368
        %v377 = vmul.f32 %v368, %v376
        %v378 = vsub.f32 1.0, %v377
        %v379 = vmul.f32 %v376, %v378
        %v380 = vadd.f32 %v376, %v379
        %vm381 = vweird.f32 %v368
        %vm382 = vweird.f32 %v376
        %vm383 = vmor %vm381, %vm382
        %v384 = vsel %vm383, %v376, %v380
        %v385 = vand.u32 2147483647, %v368
        %vm386 = vcmp.eq.f32.partialorder %v385, 8.507059e+37
        %v387 = vand.u32 %v368, 2147483648
        %v388 = vor.u32 1.1754944e-38, %v387
        %v389 = vsel %vm386, %v388, %v384
        %v390 = vmul.f32 1.0, %v389
        %v391 = vrcp.pop %v369
        %v392 = vmul.f32 %v369, %v391
        %v393 = vsub.f32 1.0, %v392
        %v394 = vmul.f32 %v391, %v393
        %v395 = vadd.f32 %v391, %v394
        %vm396 = vweird.f32 %v369
        %vm397 = vweird.f32 %v391
        %vm398 = vmor %vm396, %vm397
        %v399 = vsel %vm398, %v391, %v395
        %v400 = vand.u32 2147483647, %v369
        %vm401 = vcmp.eq.f32.partialorder %v400, 8.507059e+37
        %v402 = vand.u32 %v369, 2147483648
        %v403 = vor.u32 1.1754944e-38, %v402
        %v404 = vsel %vm401, %v403, %v399
        %v405 = vmul.f32 1.0, %v404
        %v406 = vrcp.pop %v370
        %v407 = vmul.f32 %v370, %v406
        %v408 = vsub.f32 1.0, %v407
        %v409 = vmul.f32 %v406, %v408
        %v410 = vadd.f32 %v406, %v409
        %vm411 = vweird.f32 %v370
        %vm412 = vweird.f32 %v406
        %vm413 = vmor %vm411, %vm412
        %v414 = vsel %vm413, %v406, %v410
        %v415 = vand.u32 2147483647, %v370
        %vm416 = vcmp.eq.f32.partialorder %v415, 8.507059e+37
        %v417 = vand.u32 %v370, 2147483648
        %v418 = vor.u32 1.1754944e-38, %v417
        %v419 = vsel %vm416, %v418, %v414
        %v420 = vmul.f32 1.0, %v419
        %v421 = vrcp.pop %v371
        %v422 = vmul.f32 %v371, %v421
        %v423 = vsub.f32 1.0, %v422
        %v424 = vmul.f32 %v421, %v423
        %v425 = vadd.f32 %v421, %v424
        %vm426 = vweird.f32 %v371
        %vm427 = vweird.f32 %v421
        %vm428 = vmor %vm426, %vm427
        %v429 = vsel %vm428, %v421, %v425
        %v430 = vand.u32 2147483647, %v371
        %vm431 = vcmp.eq.f32.partialorder %v430, 8.507059e+37
        %v432 = vand.u32 %v371, 2147483648
        %v433 = vor.u32 1.1754944e-38, %v432
        %v434 = vsel %vm431, %v433, %v429
        %v435 = vmul.f32 1.0, %v434
        %v436 = vrcp.pop %v372
        %v437 = vmul.f32 %v372, %v436
        %v438 = vsub.f32 1.0, %v437
        %v439 = vmul.f32 %v436, %v438
        %v440 = vadd.f32 %v436, %v439
        %vm441 = vweird.f32 %v372
        %vm442 = vweird.f32 %v436
        %vm443 = vmor %vm441, %vm442
        %v444 = vsel %vm443, %v436, %v440
        %v445 = vand.u32 2147483647, %v372
        %vm446 = vcmp.eq.f32.partialorder %v445, 8.507059e+37
        %v447 = vand.u32 %v372, 2147483648
        %v448 = vor.u32 1.1754944e-38, %v447
        %v449 = vsel %vm446, %v448, %v444
        %v450 = vmul.f32 1.0, %v449
        %v451 = vrcp.pop %v373
        %v452 = vmul.f32 %v373, %v451
        %v453 = vsub.f32 1.0, %v452
        %v454 = vmul.f32 %v451, %v453
        %v455 = vadd.f32 %v451, %v454
        %vm456 = vweird.f32 %v373
        %vm457 = vweird.f32 %v451
        %vm458 = vmor %vm456, %vm457
        %v459 = vsel %vm458, %v451, %v455
        %v460 = vand.u32 2147483647, %v373
        %vm461 = vcmp.eq.f32.partialorder %v460, 8.507059e+37
        %v462 = vand.u32 %v373, 2147483648
        %v463 = vor.u32 1.1754944e-38, %v462
        %v464 = vsel %vm461, %v463, %v459
        %v465 = vmul.f32 1.0, %v464
        %v466 = vrcp.pop %v374
        %v467 = vmul.f32 %v374, %v466
        %v468 = vsub.f32 1.0, %v467
        %v469 = vmul.f32 %v466, %v468
        %v470 = vadd.f32 %v466, %v469
        %vm471 = vweird.f32 %v374
        %vm472 = vweird.f32 %v466
        %vm473 = vmor %vm471, %vm472
        %v474 = vsel %vm473, %v466, %v470
        %v475 = vand.u32 2147483647, %v374
        %vm476 = vcmp.eq.f32.partialorder %v475, 8.507059e+37
        %v477 = vand.u32 %v374, 2147483648
        %v478 = vor.u32 1.1754944e-38, %v477
        %v479 = vsel %vm476, %v478, %v474
        %v480 = vmul.f32 1.0, %v479
        %v481 = vrcp.pop %v375
        %v482 = vmul.f32 %v375, %v481
        %v483 = vsub.f32 1.0, %v482
        %v484 = vmul.f32 %v481, %v483
        %v485 = vadd.f32 %v481, %v484
        %vm486 = vweird.f32 %v375
        %vm487 = vweird.f32 %v481
        %vm488 = vmor %vm486, %vm487
        %v489 = vsel %vm488, %v481, %v485
        %v490 = vand.u32 2147483647, %v375
        %vm491 = vcmp.eq.f32.partialorder %v490, 8.507059e+37
        %v492 = vand.u32 %v375, 2147483648
        %v493 = vor.u32 1.1754944e-38, %v492
        %v494 = vsel %vm491, %v493, %v489
        %v495 = vmul.f32 1.0, %v494
        %v496 = vmul.f32 %v191, %v390
        %v497 = vmul.f32 %v192, %v390
        %v498 = vmul.f32 %v193, %v405
        %v499 = vmul.f32 %v194, %v405
        %v500 = vmul.f32 %v195, %v420
        %v501 = vmul.f32 %v196, %v420
        %v502 = vmul.f32 %v197, %v435
        %v503 = vmul.f32 %v198, %v435
        %v504 = vmul.f32 %v199, %v450
        %v505 = vmul.f32 %v200, %v450
        %v506 = vmul.f32 %v201, %v465
        %v507 = vmul.f32 %v202, %v465
        %v508 = vmul.f32 %v203, %v480
        %v509 = vmul.f32 %v204, %v480
        %v510 = vmul.f32 %v205, %v495
        %v511 = vmul.f32 %v206, %v495
        %512 = vst [vmem:[%s190] sm:$0xff] %v496
        %513 = vst [vmem:[%s190 + $0x8] sm:$0xff] %v497
        %514 = vst [vmem:[%s190 + $0x10] sm:$0xff] %v498
        %515 = vst [vmem:[%s190 + $0x18] sm:$0xff] %v499
        %516 = vst [vmem:[%s190 + $0x20] sm:$0xff] %v500
        %517 = vst [vmem:[%s190 + $0x28] sm:$0xff] %v501
        %518 = vst [vmem:[%s190 + $0x30] sm:$0xff] %v502
        %519 = vst [vmem:[%s190 + $0x38] sm:$0xff] %v503
        %520 = vst [vmem:[%s190 + $0x40] sm:$0xff] %v504
        %521 = vst [vmem:[%s190 + $0x48] sm:$0xff] %v505
        %522 = vst [vmem:[%s190 + $0x50] sm:$0xff] %v506
        %523 = vst [vmem:[%s190 + $0x58] sm:$0xff] %v507
        %524 = vst [vmem:[%s190 + $0x60] sm:$0xff] %v508
        %525 = vst [vmem:[%s190 + $0x68] sm:$0xff] %v509
        %526 = vst [vmem:[%s190 + $0x70] sm:$0xff] %v510
        %527 = vst [vmem:[%s190 + $0x78] sm:$0xff] %v511
        %s528 = sand.u32 %s96, 1
        %s529 = scalar_lea.sflag [#allocation4], %s528
        %s530 = sand.u32 %s96, 1
        %s531 = smul.addr %s530, 128
        %s532 = scalar_lea.vmem [#allocation5], %s531
        // Predicated region
        $region37: #{tpu_custom_call.1} parent=31 // pred_check
          %p533 = pneg %p106
        $region38: #{tpu_custom_call.1} parent=31 // pred_check_branch
          %535 = sbr.rel (%p533) target = $region40
        $region39: #{tpu_custom_call.1} parent=31 // pred_region
          %537 = vsyncadd %s529, 0
          %s538 = smul.addr %s20, 16
          %s539 = smul.addr %s538, 8
          %s540 = scalar_lea.hbm %s3, %s539
          %s541 = sshll.u32 %s532, 4
          %s542 = int_to_ptr.vmem [resolvable:$true] %s541
          %s543 = sshll.u32 %s540, 4
          %s544 = int_to_ptr.hbm [resolvable:$true] %s543
          %549 = dma.vmem_to_hbm [thread:$0]  %s542, 2048, %s544, %s529, 256, 256, 16
        $region40: #{tpu_custom_call.1} parent=31 // pred_fallthru
          _
      $region32: #{tpu_custom_call.1} parent=5 // pred_fallthru
        _
      %p550 = scmp.le.s32.totalorder 2, %s15
      // Predicated region
      $region41: #{tpu_custom_call.1} parent=5 // pred_check
        %p551 = pneg %p550
      $region42: #{tpu_custom_call.1} parent=5 // pred_check_branch
        %553 = sbr.rel (%p551) target = $region44
      $region43: #{tpu_custom_call.1} parent=5 // pred_region
        %s554 = ssub.s32 %s15, 2
        // Predicated region
        $region45: #{tpu_custom_call.1} parent=43 // pred_check
          %p555 = pneg %p112
        $region46: #{tpu_custom_call.1} parent=43 // pred_check_branch
          %557 = sbr.rel (%p555) target = $region48
        $region47: #{tpu_custom_call.1} parent=43 // pred_region
          %s558 = sand.u32 %s97, 1
          %s559 = scalar_lea.sflag [#allocation4], %s558
          %s560 = sand.u32 %s97, 1
          %s561 = smul.addr %s560, 128
          %s562 = scalar_lea.vmem [#allocation5], %s561
          %564 = dma.done %s559, 2048
        $region48: #{tpu_custom_call.1} parent=43 // pred_fallthru
          _
      $region44: #{tpu_custom_call.1} parent=5 // pred_fallthru
        _
    $region6: #{tpu_custom_call.1} parent=1 // loop_footer
      %s19 = sadd.s32 1, %s15
    $region7: #{tpu_custom_call.1} parent=1 // loop_footer_branch
      %14 = sbr.rel target = $region3
    $region8: #{tpu_custom_call.1} parent=1 // loop_exit
      _
    %565 = vsyncpa [#allocation3], 1
    %s566 = scalar_lea.sflag [#allocation3], 1
    %567 = vsyncpa %s566, 1
    %568 = vsyncpa [#allocation4], 1
    %s569 = scalar_lea.sflag [#allocation4], 1
    %570 = vsyncpa %s569, 1

</llo_original>
